<compile_context>
chip_gen: v5e
topology: v5e:2x2
jax: 0.10.0
libtpu: 0.0.40
codegen_flags: <defaults>
</compile_context>

<pallas_src>
import functools
import math

import jax
import jax.numpy as jnp
from jax.experimental import pallas as pl
from jax.experimental.pallas import tpu as pltpu

D_MODEL = 32
N_HEADS = 4
D_HEAD = D_MODEL // N_HEADS
NEG_INF = -1.0e9


# ------------------------- in-kernel attention core -------------------------

def _attend_all_heads(q2, k2, v2, bias_ref):
    """q2: [Tq, D] f32, k2/v2: [Tk, D] f32, bias_ref: Ref[1, Tq, Tk] or None.

    Single batched score/value dot_general over all heads and ONE softmax over
    the whole [H, Tq, Tk] tensor. Returns [Tq, D] f32.
    """
    H, Dh, D = N_HEADS, D_HEAD, D_MODEL
    Tq, Tk = q2.shape[0], k2.shape[0]
    bf16 = jnp.bfloat16

    # One layout rearrangement per tensor: [T, H*Dh] -> [H, T, Dh].
    q_h = q2.reshape(Tq, H, Dh).transpose(1, 0, 2)
    k_h = k2.reshape(Tk, H, Dh).transpose(1, 0, 2)
    v_h = v2.reshape(Tk, H, Dh).transpose(1, 0, 2)

    # Scale 1/sqrt(d_k) is already folded into W_q / b_q.
    s = jnp.einsum("hqd,hkd->hqk", q_h.astype(bf16), k_h.astype(bf16),
                   preferred_element_type=jnp.float32)            # [H, Tq, Tk] f32
    if bias_ref is not None:
        s = s + bias_ref[...]                                     # bcast over heads

    # One softmax for all heads (f32 elementwise; EUP reciprocal).
    s = s - jnp.max(s, axis=-1, keepdims=True)
    e = jnp.exp(s)
    p = e * pl.reciprocal(jnp.sum(e, axis=-1, keepdims=True), approx=True)

    o_h = jnp.einsum("hqk,hkd->hqd", p.astype(bf16), v_h.astype(bf16),
                     preferred_element_type=jnp.float32)          # [H, Tq, Dh]
    return o_h.transpose(1, 0, 2).reshape(Tq, D)                  # [Tq, D]


# --------------------------------- kernels ----------------------------------

def _mha_self_kernel(*refs, has_mask):
    """Self-attention: fused QKV projection (single lane-dense N=3*D matmul)."""
    if has_mask:
        x_ref, wqkv_ref, bqkv_ref, wo_ref, bo_ref, bias_ref, o_ref = refs
    else:
        x_ref, wqkv_ref, bqkv_ref, wo_ref, bo_ref, o_ref = refs
        bias_ref = None
    D = D_MODEL
    x = x_ref[0].astype(jnp.bfloat16)                             # [Tq, D]
    qkv = jnp.dot(x, wqkv_ref[...],
                  preferred_element_type=jnp.float32) + bqkv_ref[...]   # [Tq, 3D]
    o2 = _attend_all_heads(qkv[:, :D], qkv[:, D:2 * D], qkv[:, 2 * D:], bias_ref)
    o_ref[0] = (jnp.dot(o2.astype(jnp.bfloat16), wo_ref[...],
                        preferred_element_type=jnp.float32) + bo_ref[...])


def _mha_cross_kernel(*refs, has_mask):
    """Cross-attention (key is value == memory): fused KV projection (N=2*D)."""
    if has_mask:
        (q_ref, kv_ref, wq_ref, bq_ref, wkv_ref, bkv_ref,
         wo_ref, bo_ref, bias_ref, o_ref) = refs
    else:
        (q_ref, kv_ref, wq_ref, bq_ref, wkv_ref, bkv_ref,
         wo_ref, bo_ref, o_ref) = refs
        bias_ref = None
    D = D_MODEL
    q2 = jnp.dot(q_ref[0].astype(jnp.bfloat16), wq_ref[...],
                 preferred_element_type=jnp.float32) + bq_ref[...]       # [Tq, D]
    kv = jnp.dot(kv_ref[0].astype(jnp.bfloat16), wkv_ref[...],
                 preferred_element_type=jnp.float32) + bkv_ref[...]      # [Tk, 2D]
    o2 = _attend_all_heads(q2, kv[:, :D], kv[:, D:], bias_ref)
    o_ref[0] = (jnp.dot(o2.astype(jnp.bfloat16), wo_ref[...],
                        preferred_element_type=jnp.float32) + bo_ref[...])


# ------------------------- one-time weight preparation -----------------------

def prepare_weights(params):
    """Fold 1/sqrt(d_k) into W_q/b_q, fuse QKV / KV weights, pre-cast MXU operands
    to bf16. Done once — removes all per-call concatenate/stack work."""
    scale = 1.0 / math.sqrt(D_HEAD)
    wq_s = params["wq"] * scale
    bq_s = params["bq"] * scale
    bf16, f32 = jnp.bfloat16, jnp.float32
    return {
        "wqkv": jnp.concatenate([wq_s, params["wk"], params["wv"]], axis=1).astype(bf16),
        "bqkv": jnp.concatenate([bq_s, params["bk"], params["bv"]]
                                ).reshape(1, 3 * D_MODEL).astype(f32),
        "wq": wq_s.astype(bf16),
        "bq": bq_s.reshape(1, D_MODEL).astype(f32),
        "wkv": jnp.concatenate([params["wk"], params["wv"]], axis=1).astype(bf16),
        "bkv": jnp.concatenate([params["bk"], params["bv"]]
                               ).reshape(1, 2 * D_MODEL).astype(f32),
        "wo": params["wo"].astype(bf16),
        "bo": params["bo"].reshape(1, D_MODEL).astype(f32),
    }


def make_mask_bias(mask, batch, tq, tk):
    """mask (bool / 0-1, broadcastable to [B, Tq, Tk]) -> additive f32 bias.
    Precomputed once per mask, not per forward call."""
    m = jnp.broadcast_to(mask.astype(bool), (batch, tq, tk))
    return jnp.where(m, 0.0, NEG_INF).astype(jnp.float32)


# --------------------------------- wrappers ----------------------------------

def _weight_spec(shape):
    return pl.BlockSpec(shape, lambda *_: (0,) * len(shape))


def _act_spec(t, d):
    return pl.BlockSpec((1, t, d), lambda b: (b, 0, 0))


def _launch(kernel, inputs, in_specs, B, Tq, Tk):
    flops = (2 * B * Tq * D_MODEL * (3 * D_MODEL)              # projections (upper bound)
             + 4 * B * N_HEADS * Tq * Tk * D_HEAD               # scores + context
             + 2 * B * Tq * D_MODEL * D_MODEL)                  # output projection
    bytes_accessed = sum(int(a.size) * a.dtype.itemsize for a in inputs) \
        + B * Tq * D_MODEL * 4
    return pl.pallas_call(
        kernel,
        grid=(B,),
        in_specs=in_specs,
        out_specs=_act_spec(Tq, D_MODEL),
        out_shape=jax.ShapeDtypeStruct((B, Tq, D_MODEL), jnp.float32),
        compiler_params=pltpu.CompilerParams(dimension_semantics=("parallel",)),
        cost_estimate=pl.CostEstimate(flops=flops,
                                      transcendentals=B * N_HEADS * Tq * Tk,
                                      bytes_accessed=bytes_accessed),
    )(*inputs)


def mha_self_attention(w, x, mask_bias=None):
    """x: [B, T, D_MODEL]; mask_bias: [B, T, T] additive f32 bias or None."""
    B, T, D = x.shape
    has_mask = mask_bias is not None
    inputs = [x, w["wqkv"], w["bqkv"], w["wo"], w["bo"]]
    in_specs = [_act_spec(T, D), _weight_spec((D, 3 * D)), _weight_spec((1, 3 * D)),
                _weight_spec((D, D)), _weight_spec((1, D))]
    if has_mask:
        inputs.append(mask_bias)
        in_specs.append(pl.BlockSpec((1, T, T), lambda b: (b, 0, 0)))
    kernel = functools.partial(_mha_self_kernel, has_mask=has_mask)
    return _launch(kernel, inputs, in_specs, B, T, T)


def mha_cross_attention(w, query, memory, mask_bias=None):
    """query: [B, Tq, D_MODEL], memory: [B, Tk, D_MODEL] (key == value == memory)."""
    B, Tq, D = query.shape
    Tk = memory.shape[1]
    has_mask = mask_bias is not None
    inputs = [query, memory, w["wq"], w["bq"], w["wkv"], w["bkv"], w["wo"], w["bo"]]
    in_specs = [_act_spec(Tq, D), _act_spec(Tk, D),
                _weight_spec((D, D)), _weight_spec((1, D)),
                _weight_spec((D, 2 * D)), _weight_spec((1, 2 * D)),
                _weight_spec((D, D)), _weight_spec((1, D))]
    if has_mask:
        inputs.append(mask_bias)
        in_specs.append(pl.BlockSpec((1, Tq, Tk), lambda b: (b, 0, 0)))
    kernel = functools.partial(_mha_cross_kernel, has_mask=has_mask)
    return _launch(kernel, inputs, in_specs, B, Tq, Tk)


def multi_head_attention(w, query, key, value, mask_bias=None):
    """Compatibility dispatcher mirroring MultiHeadedAttention.forward.
    Prefer calling mha_self_attention / mha_cross_attention directly (explicit
    dispatch; object-identity checks do not survive jit tracing)."""
    if (query is key) and (key is value):
        return mha_self_attention(w, query, mask_bias)
    if key is value:
        return mha_cross_attention(w, query, key, mask_bias)
    # TODO(synk): distinct key/value tensors are never used by the Annotated
    # Transformer; only fused self-/cross-attention paths are implemented.
    raise NotImplementedError("key is not value: unfused K/V path not implemented")


# --------------------------- pure-JAX reference ------------------------------

def mha_reference(params, query, key, value, mask=None):
    B, Tq, D = query.shape
    Tk = key.shape[1]

    def proj(x, w, b, T):
        return (x @ w + b).reshape(B, T, N_HEADS, D_HEAD).transpose(0, 2, 1, 3)

    q = proj(query, params["wq"], params["bq"], Tq)
    k = proj(key, params["wk"], params["bk"], Tk)
    v = proj(value, params["wv"], params["bv"], Tk)
    s = jnp.einsum("bhqd,bhkd->bhqk", q, k) / math.sqrt(D_HEAD)
    if mask is not None:
        s = jnp.where(mask.astype(bool)[None, None], s, NEG_INF)
    p = jax.nn.softmax(s, axis=-1)
    o = jnp.einsum("bhqk,bhkd->bhqd", p, v).transpose(0, 2, 1, 3).reshape(B, Tq, D)
    return o @ params["wo"] + params["bo"]


# ------------------------------ parameter init -------------------------------

def init_params(key):
    ks = jax.random.split(key, 4)
    bound = 1.0 / math.sqrt(D_MODEL)
    p = {}
    for name, k in zip(("q", "k", "v", "o"), ks):
        kw, kb = jax.random.split(k)
        p["w" + name] = jax.random.uniform(kw, (D_MODEL, D_MODEL), jnp.float32,
                                           -bound, bound)
        p["b" + name] = jax.random.uniform(kb, (D_MODEL,), jnp.float32,
                                           -bound, bound)
    return p


# ----------------------------------- main ------------------------------------

if __name__ == "__main__":
    B, T, S = 2, 8, 16
    key0 = jax.random.PRNGKey(0)
    kp, kx, km = jax.random.split(key0, 3)

    params = init_params(kp)
    weights = prepare_weights(params)                 # one-time fused/scaled/bf16
    x = jax.random.normal(kx, (B, T, D_MODEL), jnp.float32)
    memory = jax.random.normal(km, (B, S, D_MODEL), jnp.float32)
    causal = jnp.tril(jnp.ones((T, T), jnp.bool_))
    causal_bias = make_mask_bias(causal, B, T, T)     # one-time additive bias

    # 1) self-attention with a causal mask  -> fused-QKV kernel path
    self_fn = jax.jit(mha_self_attention)
    out_self = jax.block_until_ready(self_fn(weights, x, causal_bias))

    # 2) cross-attention over memory, no mask -> fused-KV kernel path
    cross_fn = jax.jit(mha_cross_attention)
    out_cross = jax.block_until_ready(cross_fn(weights, x, memory))

    assert out_self.shape == (B, T, D_MODEL)
    assert out_cross.shape == (B, T, D_MODEL)
    assert bool(jnp.all(jnp.isfinite(out_self)))
    assert bool(jnp.all(jnp.isfinite(out_cross)))

    ref_self = mha_reference(params, x, x, x, causal)
    ref_cross = mha_reference(params, x, memory, memory)
    err = max(float(jnp.max(jnp.abs(out_self - ref_self))),
              float(jnp.max(jnp.abs(out_cross - ref_cross))))
    assert err < 5e-2, f"mismatch vs reference: {err}"

    print("KERNEL_OK")
</pallas_src>

<mosaic_0001>
module attributes {stable_mosaic.version = 11 : i64} {
  func.func @_mha_self_kernel(%arg0: i32, %arg1: memref<1x8x32xf32, #tpu.memory_space<vmem>>, %arg2: memref<32x96xbf16, #tpu.memory_space<vmem>>, %arg3: memref<1x96xf32, #tpu.memory_space<vmem>>, %arg4: memref<32x32xbf16, #tpu.memory_space<vmem>>, %arg5: memref<1x32xf32, #tpu.memory_space<vmem>>, %arg6: memref<1x8x8xf32, #tpu.memory_space<vmem>>, %arg7: memref<1x8x32xf32, #tpu.memory_space<vmem>>) attributes {dimension_semantics = [#tpu.dimension_semantics<parallel>], iteration_bounds = array<i64: 2>, scalar_prefetch = 0 : i64, scratch_operands = 0 : i64, tpu.core_type = #tpu.core_type<tc>, window_params = [{transform_indices = @transform_0, window_bounds = array<i64: 1, 8, 32>}, {pipeline_mode = #tpu.pipeline_mode<synchronous>, transform_indices = @transform_1, window_bounds = array<i64: 32, 96>}, {pipeline_mode = #tpu.pipeline_mode<synchronous>, transform_indices = @transform_2, window_bounds = array<i64: 1, 96>}, {pipeline_mode = #tpu.pipeline_mode<synchronous>, transform_indices = @transform_3, window_bounds = array<i64: 32, 32>}, {pipeline_mode = #tpu.pipeline_mode<synchronous>, transform_indices = @transform_4, window_bounds = array<i64: 1, 32>}, {transform_indices = @transform_5, window_bounds = array<i64: 1, 8, 8>}, {transform_indices = @transform_6, window_bounds = array<i64: 1, 8, 32>}]} {
    %c0 = arith.constant 0 : index
    %c0_0 = arith.constant 0 : index
    %c0_1 = arith.constant 0 : index
    %0 = vector.load %arg1[%c0, %c0_0, %c0_1] : memref<1x8x32xf32, #tpu.memory_space<vmem>>, vector<1x8x32xf32>
    %1 = vector.shape_cast %0 : vector<1x8x32xf32> to vector<8x32xf32>
    %2 = arith.truncf %1 : vector<8x32xf32> to vector<8x32xbf16>
    %c0_2 = arith.constant 0 : index
    %c0_3 = arith.constant 0 : index
    %3 = vector.load %arg2[%c0_2, %c0_3] : memref<32x96xbf16, #tpu.memory_space<vmem>>, vector<32x96xbf16>
    %cst = arith.constant dense<0.000000e+00> : vector<8x96xf32>
    %4 = tpu.matmul %2, %3, %cst {dimension_numbers = #tpu.dot_dimension_numbers<[1], [0], [0], [1], [0, 0, 1, 1], [], []>} : vector<8x32xbf16>, vector<32x96xbf16>, vector<8x96xf32> -> vector<8x96xf32>
    %c0_4 = arith.constant 0 : index
    %c0_5 = arith.constant 0 : index
    %5 = vector.load %arg3[%c0_4, %c0_5] : memref<1x96xf32, #tpu.memory_space<vmem>>, vector<1x96xf32>
    %6 = vector.broadcast %5 : vector<1x96xf32> to vector<8x96xf32>
    %7 = arith.addf %4, %6 : vector<8x96xf32>
    %8 = vector.extract_strided_slice %7 {offsets = [0, 0], sizes = [8, 32], strides = [1, 1]} : vector<8x96xf32> to vector<8x32xf32>
    %9 = vector.extract_strided_slice %7 {offsets = [0, 32], sizes = [8, 32], strides = [1, 1]} : vector<8x96xf32> to vector<8x32xf32>
    %10 = vector.extract_strided_slice %7 {offsets = [0, 64], sizes = [8, 32], strides = [1, 1]} : vector<8x96xf32> to vector<8x32xf32>
    %11 = vector.shape_cast %8 : vector<8x32xf32> to vector<8x4x8xf32>
    %12 = tpu.transpose %11, [1, 0, 2] : vector<8x4x8xf32> -> vector<4x8x8xf32>
    %13 = vector.shape_cast %9 : vector<8x32xf32> to vector<8x4x8xf32>
    %14 = tpu.transpose %13, [1, 0, 2] : vector<8x4x8xf32> -> vector<4x8x8xf32>
    %15 = vector.shape_cast %10 : vector<8x32xf32> to vector<8x4x8xf32>
    %16 = tpu.transpose %15, [1, 0, 2] : vector<8x4x8xf32> -> vector<4x8x8xf32>
    %17 = arith.truncf %12 : vector<4x8x8xf32> to vector<4x8x8xbf16>
    %18 = arith.truncf %14 : vector<4x8x8xf32> to vector<4x8x8xbf16>
    "tpu.trace_start"() <{level = 10 : i32, message = "hqd,hkd->hqk"}> : () -> ()
    %cst_6 = arith.constant dense<0.000000e+00> : vector<4x8x8xf32>
    %19 = tpu.matmul %17, %18, %cst_6 {dimension_numbers = #tpu.dot_dimension_numbers<[2], [2], [1], [1], [0, 0, 0, 1, 1, 1], [0], [0]>} : vector<4x8x8xbf16>, vector<4x8x8xbf16>, vector<4x8x8xf32> -> vector<4x8x8xf32>
    "tpu.trace_stop"() : () -> ()
    %c0_7 = arith.constant 0 : index
    %c0_8 = arith.constant 0 : index
    %c0_9 = arith.constant 0 : index
    %20 = vector.load %arg6[%c0_7, %c0_8, %c0_9] : memref<1x8x8xf32, #tpu.memory_space<vmem>>, vector<1x8x8xf32>
    %21 = vector.broadcast %20 : vector<1x8x8xf32> to vector<4x8x8xf32>
    %22 = arith.addf %19, %21 : vector<4x8x8xf32>
    %cst_10 = arith.constant dense<0xFF800000> : vector<4x8xf32>
    %23 = vector.multi_reduction <maximumf>, %22, %cst_10 [2] : vector<4x8x8xf32> to vector<4x8xf32>
    %24 = vector.shape_cast %23 : vector<4x8xf32> to vector<4x8x1xf32>
    %25 = vector.broadcast %24 : vector<4x8x1xf32> to vector<4x8x8xf32>
    %26 = arith.subf %22, %25 : vector<4x8x8xf32>
    %27 = math.exp %26 : vector<4x8x8xf32>
    %cst_11 = arith.constant dense<0.000000e+00> : vector<4x8xf32>
    %28 = vector.multi_reduction <add>, %27, %cst_11 [2] : vector<4x8x8xf32> to vector<4x8xf32>
    %29 = vector.shape_cast %28 : vector<4x8xf32> to vector<4x8x1xf32>
    %30 = tpu.reciprocal %29 {approx = true} : vector<4x8x1xf32> -> vector<4x8x1xf32>
    %31 = vector.broadcast %30 : vector<4x8x1xf32> to vector<4x8x8xf32>
    %32 = arith.mulf %27, %31 : vector<4x8x8xf32>
    %33 = arith.truncf %32 : vector<4x8x8xf32> to vector<4x8x8xbf16>
    %34 = arith.truncf %16 : vector<4x8x8xf32> to vector<4x8x8xbf16>
    "tpu.trace_start"() <{level = 10 : i32, message = "hqk,hkd->hqd"}> : () -> ()
    %cst_12 = arith.constant dense<0.000000e+00> : vector<4x8x8xf32>
    %35 = tpu.matmul %33, %34, %cst_12 {dimension_numbers = #tpu.dot_dimension_numbers<[2], [1], [1], [2], [0, 0, 0, 1, 1, 2], [0], [0]>} : vector<4x8x8xbf16>, vector<4x8x8xbf16>, vector<4x8x8xf32> -> vector<4x8x8xf32>
    "tpu.trace_stop"() : () -> ()
    %36 = tpu.transpose %35, [1, 0, 2] : vector<4x8x8xf32> -> vector<8x4x8xf32>
    %37 = vector.shape_cast %36 : vector<8x4x8xf32> to vector<8x32xf32>
    %38 = arith.truncf %37 : vector<8x32xf32> to vector<8x32xbf16>
    %c0_13 = arith.constant 0 : index
    %c0_14 = arith.constant 0 : index
    %39 = vector.load %arg4[%c0_13, %c0_14] : memref<32x32xbf16, #tpu.memory_space<vmem>>, vector<32x32xbf16>
    %cst_15 = arith.constant dense<0.000000e+00> : vector<8x32xf32>
    %40 = tpu.matmul %38, %39, %cst_15 {dimension_numbers = #tpu.dot_dimension_numbers<[1], [0], [0], [1], [0, 0, 1, 1], [], []>} : vector<8x32xbf16>, vector<32x32xbf16>, vector<8x32xf32> -> vector<8x32xf32>
    %c0_16 = arith.constant 0 : index
    %c0_17 = arith.constant 0 : index
    %41 = vector.load %arg5[%c0_16, %c0_17] : memref<1x32xf32, #tpu.memory_space<vmem>>, vector<1x32xf32>
    %42 = vector.broadcast %41 : vector<1x32xf32> to vector<8x32xf32>
    %43 = arith.addf %40, %42 : vector<8x32xf32>
    %c0_18 = arith.constant 0 : index
    %c0_19 = arith.constant 0 : index
    %c0_20 = arith.constant 0 : index
    %44 = vector.load %arg7[%c0_18, %c0_19, %c0_20] : memref<1x8x32xf32, #tpu.memory_space<vmem>>, vector<1x8x32xf32>
    %45 = vector.shape_cast %44 : vector<1x8x32xf32> to vector<8x32xf32>
    %46 = vector.shape_cast %43 : vector<8x32xf32> to vector<1x8x32xf32>
    tpu.vector_store %arg7[%c0_18, %c0_19, %c0_20], %46 {strides = array<i32>} : memref<1x8x32xf32, #tpu.memory_space<vmem>>, vector<1x8x32xf32>,
    return
  }
  func.func @transform_0(%arg0: i32) -> (i32, i32, i32) {
    %c0_i32 = arith.constant 0 : i32
    %c0_i32_0 = arith.constant 0 : i32
    %c0_i32_1 = arith.constant 0 : i32
    return %arg0, %c0_i32, %c0_i32_0 : i32, i32, i32
  }
  func.func @transform_1(%arg0: i32) -> (i32, i32) {
    %c0_i32 = arith.constant 0 : i32
    %c0_i32_0 = arith.constant 0 : i32
    %c0_i32_1 = arith.constant 0 : i32
    return %c0_i32, %c0_i32_0 : i32, i32
  }
  func.func @transform_2(%arg0: i32) -> (i32, i32) {
    %c0_i32 = arith.constant 0 : i32
    %c0_i32_0 = arith.constant 0 : i32
    %c0_i32_1 = arith.constant 0 : i32
    return %c0_i32, %c0_i32_0 : i32, i32
  }
  func.func @transform_3(%arg0: i32) -> (i32, i32) {
    %c0_i32 = arith.constant 0 : i32
    %c0_i32_0 = arith.constant 0 : i32
    %c0_i32_1 = arith.constant 0 : i32
    return %c0_i32, %c0_i32_0 : i32, i32
  }
  func.func @transform_4(%arg0: i32) -> (i32, i32) {
    %c0_i32 = arith.constant 0 : i32
    %c0_i32_0 = arith.constant 0 : i32
    %c0_i32_1 = arith.constant 0 : i32
    return %c0_i32, %c0_i32_0 : i32, i32
  }
  func.func @transform_5(%arg0: i32) -> (i32, i32, i32) {
    %c0_i32 = arith.constant 0 : i32
    %c0_i32_0 = arith.constant 0 : i32
    %c0_i32_1 = arith.constant 0 : i32
    return %arg0, %c0_i32, %c0_i32_0 : i32, i32, i32
  }
  func.func @transform_6(%arg0: i32) -> (i32, i32, i32) {
    %c0_i32 = arith.constant 0 : i32
    %c0_i32_0 = arith.constant 0 : i32
    %c0_i32_1 = arith.constant 0 : i32
    return %arg0, %c0_i32, %c0_i32_0 : i32, i32, i32
  }
}

</mosaic_0001>

<llo_original>
// kernel: mha_self_attention.1
$region0: #{mha_self_attention.1}
  #allocation0 [shape = 'u32[]', space=smem, size = 0x4, offset = 0x4, fixed_abs, tag = 'smem constant byte address 0x4 - core index']
  #allocation1 [shape = 'u32[72,128]{1,0:T(1,128)}', space=vmem, size = 0x9000, scoped, tag = 'internal scratch']
  %s0 = inlined_call_operand.hbm [shape: f32[2,8,32], index: 0, kind: input, shape index: {}]
  %s1 = inlined_call_operand.hbm [shape: bf16[32,96], index: 1, kind: input, shape index: {}]
  %s2 = inlined_call_operand.hbm [shape: f32[1,96], index: 2, kind: input, shape index: {}]
  %s3 = inlined_call_operand.hbm [shape: bf16[32,32], index: 3, kind: input, shape index: {}]
  %s4 = inlined_call_operand.hbm [shape: f32[1,32], index: 4, kind: input, shape index: {}]
  %s5 = inlined_call_operand.hbm [shape: f32[2,8,8], index: 5, kind: input, shape index: {}]
  %s6 = inlined_call_operand.hbm [shape: f32[2,8,32], index: 6, kind: output, shape index: {}]
  %s7 = sld [smem:[#allocation0]]
  $region81: #{mha_self_attention.1} parent=0
    _
  %s9 = ssub.s32 1, %s7
  %s10 = scalar_select 0, %s9, %s7
  $region1: #{mha_self_attention.1} parent=0
    #allocation2 [shape = 'u8[8192]{0}', space=vmem, size = 0x2000, scoped, tag = 'input window, operand 0']
    #allocation3 [shape = 's32[2]{0}', space=sflag, size = 0x8, scoped, tag = 'scoped memory for mha_self_attention.1']
    #allocation4 [shape = 's32[2]{0}', space=sflag, size = 0x8, scoped, tag = 'scoped memory for mha_self_attention.1']
    #allocation5 [shape = 'u8[8192]{0}', space=vmem, size = 0x2000, scoped, tag = 'input window, operand 1, single buffered']
    #allocation6 [shape = 's32[1]{0}', space=sflag, size = 0x4, scoped, tag = 'scoped memory for mha_self_attention.1']
    #allocation7 [shape = 'u8[512]{0}', space=vmem, size = 0x400, scoped, tag = 'input window, operand 2, single buffered']
    #allocation8 [shape = 'u8[8192]{0}', space=vmem, size = 0x2000, scoped, tag = 'input window, operand 3, single buffered']
    #allocation9 [shape = 's32[1]{0}', space=sflag, size = 0x4, scoped, tag = 'scoped memory for mha_self_attention.1']
    #allocation10 [shape = 'u8[512]{0}', space=vmem, size = 0x400, scoped, tag = 'input window, operand 4, single buffered']
    #allocation11 [shape = 'u8[8192]{0}', space=vmem, size = 0x2000, scoped, tag = 'input window, operand 5']
    #allocation12 [shape = 's32[2]{0}', space=sflag, size = 0x8, scoped, tag = 'scoped memory for mha_self_attention.1']
    #allocation13 [shape = 'u8[8192]{0}', space=vmem, size = 0x2000, scoped, tag = 'output window, operand 0']
    %11 = vsyncpa [#allocation3], 0
    %s12 = scalar_lea.sflag [#allocation3], 1
    %13 = vsyncpa %s12, 0
    %14 = vsyncpa [#allocation6], 0
    %15 = vsyncpa [#allocation9], 0
    %16 = vsyncpa [#allocation12], 0
    %s17 = scalar_lea.sflag [#allocation12], 1
    %18 = vsyncpa %s17, 0
    %19 = vsyncpa [#allocation4], 0
    %s20 = scalar_lea.sflag [#allocation4], 1
    %21 = vsyncpa %s20, 0
    loop: start=0, step=1, limit=4
    $region2: #{mha_self_attention.1} parent=1 // loop_pre_header
      _
    $region3: #{mha_self_attention.1} parent=1 // loop_header
      %s23 = sphi 0, %s27
      %p24 = scmp.ge.s32.totalorder %s23, 4
      %s33 = sphi 0, %s35
      %s36 = sphi 0, %s33
      %s37 = sphi 0, %s36
      %s53 = sphi 0, %s37
      %s57 = sphi 0, %s57
      %s59 = sphi 0, %s57
      %s60 = sphi 0, %s59
      %s74 = sphi 0, %s60
      %s78 = sphi 0, %s78
      %s80 = sphi 0, %s78
      %s81 = sphi 0, %s80
      %s95 = sphi 0, %s81
      %s99 = sphi 0, %s99
      %s101 = sphi 0, %s99
      %s102 = sphi 0, %s101
      %s116 = sphi 0, %s102
      %s120 = sphi 0, %s120
      %s122 = sphi 0, %s120
      %s123 = sphi 0, %s122
      %s137 = sphi 0, %s123
      %s143 = sphi 0, %s145
      %s146 = sphi 0, %s143
      %s147 = sphi 0, %s146
      %s163 = sphi 0, %s147
      %s169 = sphi 0, %s171
      %s172 = sphi 0, %s169
      %s173 = sphi 0, %s172
      %s189 = sphi 0, %s173
    $region4: #{mha_self_attention.1} parent=1 // loop_header_branch
      %26 = sbr.rel (%p24) target = $region8
    $region5: #{mha_self_attention.1} parent=1 // loop_body
      %s28 = ssub.s32 %s23, 1
      %s29 = ssub.s32 %s23, 2
      %s30 = sadd.s32 %s23, 1
      %s31 = ssub.s32 %s23, %s30
      %p32 = scmp.eq.s32.totalorder %s31, 0
      %s34 = sadd.s32 %s33, 1
      %s35 = scalar_select %p32, %s33, %s34
      %p38 = pneg %p32
      %p39 = scmp.eq.s32.totalorder %s23, 1
      %p40 = por %p38, %p39
      %p41 = scmp.ne.s32.totalorder %s33, %s36
      %p42 = scmp.eq.s32.totalorder %s23, 0
      %p43 = por %p41, %p42
      %p44 = scmp.ne.s32.totalorder %s33, %s36
      %p45 = scmp.eq.s32.totalorder %s28, 1
      %p46 = por %p44, %p45
      %p47 = scmp.ne.s32.totalorder %s36, %s37
      %p48 = scmp.eq.s32.totalorder %s28, 0
      %p49 = por %p47, %p48
      %p50 = scmp.ne.s32.totalorder %s36, %s37
      %p51 = scmp.eq.s32.totalorder %s29, 1
      %p52 = por %p50, %p51
      %p54 = scmp.ne.s32.totalorder %s37, %s53
      %p55 = scmp.eq.s32.totalorder %s29, 0
      %p56 = por %p54, %p55
      %s58 = sadd.s32 %s57, 1
      %p61 = scmp.eq.s32.totalorder %s23, 1
      %p62 = scmp.ne.s32.totalorder %s57, %s59
      %p63 = scmp.eq.s32.totalorder %s23, 0
      %p64 = por %p62, %p63
      %p65 = scmp.ne.s32.totalorder %s57, %s59
      %p66 = scmp.eq.s32.totalorder %s28, 1
      %p67 = por %p65, %p66
      %p68 = scmp.ne.s32.totalorder %s59, %s60
      %p69 = scmp.eq.s32.totalorder %s28, 0
      %p70 = por %p68, %p69
      %p71 = scmp.ne.s32.totalorder %s59, %s60
      %p72 = scmp.eq.s32.totalorder %s29, 1
      %p73 = por %p71, %p72
      %p75 = scmp.ne.s32.totalorder %s60, %s74
      %p76 = scmp.eq.s32.totalorder %s29, 0
      %p77 = por %p75, %p76
      %s79 = sadd.s32 %s78, 1
      %p82 = scmp.eq.s32.totalorder %s23, 1
      %p83 = scmp.ne.s32.totalorder %s78, %s80
      %p84 = scmp.eq.s32.totalorder %s23, 0
      %p85 = por %p83, %p84
      %p86 = scmp.ne.s32.totalorder %s78, %s80
      %p87 = scmp.eq.s32.totalorder %s28, 1
      %p88 = por %p86, %p87
      %p89 = scmp.ne.s32.totalorder %s80, %s81
      %p90 = scmp.eq.s32.totalorder %s28, 0
      %p91 = por %p89, %p90
      %p92 = scmp.ne.s32.totalorder %s80, %s81
      %p93 = scmp.eq.s32.totalorder %s29, 1
      %p94 = por %p92, %p93
      %p96 = scmp.ne.s32.totalorder %s81, %s95
      %p97 = scmp.eq.s32.totalorder %s29, 0
      %p98 = por %p96, %p97
      %s100 = sadd.s32 %s99, 1
      %p103 = scmp.eq.s32.totalorder %s23, 1
      %p104 = scmp.ne.s32.totalorder %s99, %s101
      %p105 = scmp.eq.s32.totalorder %s23, 0
      %p106 = por %p104, %p105
      %p107 = scmp.ne.s32.totalorder %s99, %s101
      %p108 = scmp.eq.s32.totalorder %s28, 1
      %p109 = por %p107, %p108
      %p110 = scmp.ne.s32.totalorder %s101, %s102
      %p111 = scmp.eq.s32.totalorder %s28, 0
      %p112 = por %p110, %p111
      %p113 = scmp.ne.s32.totalorder %s101, %s102
      %p114 = scmp.eq.s32.totalorder %s29, 1
      %p115 = por %p113, %p114
      %p117 = scmp.ne.s32.totalorder %s102, %s116
      %p118 = scmp.eq.s32.totalorder %s29, 0
      %p119 = por %p117, %p118
      %s121 = sadd.s32 %s120, 1
      %p124 = scmp.eq.s32.totalorder %s23, 1
      %p125 = scmp.ne.s32.totalorder %s120, %s122
      %p126 = scmp.eq.s32.totalorder %s23, 0
      %p127 = por %p125, %p126
      %p128 = scmp.ne.s32.totalorder %s120, %s122
      %p129 = scmp.eq.s32.totalorder %s28, 1
      %p130 = por %p128, %p129
      %p131 = scmp.ne.s32.totalorder %s122, %s123
      %p132 = scmp.eq.s32.totalorder %s28, 0
      %p133 = por %p131, %p132
      %p134 = scmp.ne.s32.totalorder %s122, %s123
      %p135 = scmp.eq.s32.totalorder %s29, 1
      %p136 = por %p134, %p135
      %p138 = scmp.ne.s32.totalorder %s123, %s137
      %p139 = scmp.eq.s32.totalorder %s29, 0
      %p140 = por %p138, %p139
      %s141 = ssub.s32 %s23, %s30
      %p142 = scmp.eq.s32.totalorder %s141, 0
      %s144 = sadd.s32 %s143, 1
      %s145 = scalar_select %p142, %s143, %s144
      %p148 = pneg %p142
      %p149 = scmp.eq.s32.totalorder %s23, 1
      %p150 = por %p148, %p149
      %p151 = scmp.ne.s32.totalorder %s143, %s146
      %p152 = scmp.eq.s32.totalorder %s23, 0
      %p153 = por %p151, %p152
      %p154 = scmp.ne.s32.totalorder %s143, %s146
      %p155 = scmp.eq.s32.totalorder %s28, 1
      %p156 = por %p154, %p155
      %p157 = scmp.ne.s32.totalorder %s146, %s147
      %p158 = scmp.eq.s32.totalorder %s28, 0
      %p159 = por %p157, %p158
      %p160 = scmp.ne.s32.totalorder %s146, %s147
      %p161 = scmp.eq.s32.totalorder %s29, 1
      %p162 = por %p160, %p161
      %p164 = scmp.ne.s32.totalorder %s147, %s163
      %p165 = scmp.eq.s32.totalorder %s29, 0
      %p166 = por %p164, %p165
      %s167 = ssub.s32 %s23, %s30
      %p168 = scmp.eq.s32.totalorder %s167, 0
      %s170 = sadd.s32 %s169, 1
      %s171 = scalar_select %p168, %s169, %s170
      %p174 = pneg %p168
      %p175 = scmp.eq.s32.totalorder %s23, 1
      %p176 = por %p174, %p175
      %p177 = scmp.ne.s32.totalorder %s169, %s172
      %p178 = scmp.eq.s32.totalorder %s23, 0
      %p179 = por %p177, %p178
      %p180 = scmp.ne.s32.totalorder %s169, %s172
      %p181 = scmp.eq.s32.totalorder %s28, 1
      %p182 = por %p180, %p181
      %p183 = scmp.ne.s32.totalorder %s172, %s173
      %p184 = scmp.eq.s32.totalorder %s28, 0
      %p185 = por %p183, %p184
      %p186 = scmp.ne.s32.totalorder %s172, %s173
      %p187 = scmp.eq.s32.totalorder %s29, 1
      %p188 = por %p186, %p187
      %p190 = scmp.ne.s32.totalorder %s173, %s189
      %p191 = scmp.eq.s32.totalorder %s29, 0
      %p192 = por %p190, %p191
      %p193 = scmp.le.s32.totalorder 1, %s23
      %p194 = scmp.lt.s32.totalorder %s23, 3
      %p195 = pnand %p193, %p194
      %p196 = pneg %p195
      // Predicated region
      $region9: #{mha_self_attention.1} parent=5 // pred_check
        _
      $region10: #{mha_self_attention.1} parent=5 // pred_check_branch
        %198 = sbr.rel (%p195) target = $region12
      $region11: #{mha_self_attention.1} parent=5 // pred_region
        %s199 = ssub.s32 %s23, 1
        // Predicated region
        $region13: #{mha_self_attention.1} parent=11 // pred_check
          %p200 = pneg %p70
        $region14: #{mha_self_attention.1} parent=11 // pred_check_branch
          %202 = sbr.rel (%p200) target = $region16
        $region15: #{mha_self_attention.1} parent=11 // pred_region
          %204 = vsyncadd [#allocation6], 0
          %s205 = sshll.u32 %s1, 4
          %s206 = int_to_ptr.hbm [resolvable:$true] %s205
          %s207 = sshll.u32 [#allocation5], 4
          %s208 = int_to_ptr.vmem [resolvable:$true] %s207
          %213 = dma.hbm_to_vmem [thread:$0]  %s206, 256, %s208, [#allocation6], 64, 64, 4
        $region16: #{mha_self_attention.1} parent=11 // pred_fallthru
          _
        // Predicated region
        $region17: #{mha_self_attention.1} parent=11 // pred_check
          %p214 = pneg %p91
        $region18: #{mha_self_attention.1} parent=11 // pred_check_branch
          %216 = sbr.rel (%p214) target = $region20
        $region19: #{mha_self_attention.1} parent=11 // pred_region
          %218 = vsyncadd [#allocation6], 0
          %s220 = sshll.u32 %s2, 4
          %s221 = int_to_ptr.hbm [resolvable:$true] %s220
          %s222 = sshll.u32 [#allocation7], 4
          %s223 = int_to_ptr.vmem [resolvable:$true] %s222
          %225 = dma.hbm_to_vmem [thread:$0]  %s221, 16, %s223, [#allocation6]
        $region20: #{mha_self_attention.1} parent=11 // pred_fallthru
          _
        // Predicated region
        $region21: #{mha_self_attention.1} parent=11 // pred_check
          %p226 = pneg %p112
        $region22: #{mha_self_attention.1} parent=11 // pred_check_branch
          %228 = sbr.rel (%p226) target = $region24
        $region23: #{mha_self_attention.1} parent=11 // pred_region
          %230 = vsyncadd [#allocation9], 0
          %s231 = sshll.u32 %s3, 4
          %s232 = int_to_ptr.hbm [resolvable:$true] %s231
          %s233 = sshll.u32 [#allocation8], 4
          %s234 = int_to_ptr.vmem [resolvable:$true] %s233
          %239 = dma.hbm_to_vmem [thread:$0]  %s232, 256, %s234, [#allocation9], 64, 64, 4
        $region24: #{mha_self_attention.1} parent=11 // pred_fallthru
          _
        // Predicated region
        $region25: #{mha_self_attention.1} parent=11 // pred_check
          %p240 = pneg %p133
        $region26: #{mha_self_attention.1} parent=11 // pred_check_branch
          %242 = sbr.rel (%p240) target = $region28
        $region27: #{mha_self_attention.1} parent=11 // pred_region
          %244 = vsyncadd [#allocation9], 0
          %s246 = sshll.u32 %s4, 4
          %s247 = int_to_ptr.hbm [resolvable:$true] %s246
          %s248 = sshll.u32 [#allocation10], 4
          %s249 = int_to_ptr.vmem [resolvable:$true] %s248
          %251 = dma.hbm_to_vmem [thread:$0]  %s247, 16, %s249, [#allocation9]
        $region28: #{mha_self_attention.1} parent=11 // pred_fallthru
          _
      $region12: #{mha_self_attention.1} parent=5 // pred_fallthru
        _
      %p252 = scmp.lt.s32.totalorder %s23, 2
      // Predicated region
      $region29: #{mha_self_attention.1} parent=5 // pred_check
        %p253 = pneg %p252
      $region30: #{mha_self_attention.1} parent=5 // pred_check_branch
        %255 = sbr.rel (%p253) target = $region32
      $region31: #{mha_self_attention.1} parent=5 // pred_region
        // Predicated region
        $region33: #{mha_self_attention.1} parent=31 // pred_check
          %p256 = pneg %p43
        $region34: #{mha_self_attention.1} parent=31 // pred_check_branch
          %258 = sbr.rel (%p256) target = $region36
        $region35: #{mha_self_attention.1} parent=31 // pred_region
          %s259 = sand.u32 %s33, 1
          %s260 = scalar_lea.sflag [#allocation3], %s259
          %s261 = sand.u32 %s33, 1
          %s262 = smul.addr %s261, 8
          %s263 = scalar_lea.vmem [#allocation2], %s262
          %265 = vsyncadd %s260, 0
          %s266 = smul.addr %s23, 8
          %s267 = scalar_lea.hbm %s0, %s266
          %s269 = sshll.u32 %s267, 4
          %s270 = int_to_ptr.hbm [resolvable:$true] %s269
          %s271 = sshll.u32 %s263, 4
          %s272 = int_to_ptr.vmem [resolvable:$true] %s271
          %274 = dma.hbm_to_vmem [thread:$0]  %s270, 128, %s272, %s260
        $region36: #{mha_self_attention.1} parent=31 // pred_fallthru
          _
        // Predicated region
        $region37: #{mha_self_attention.1} parent=31 // pred_check
          %p275 = pneg %p153
        $region38: #{mha_self_attention.1} parent=31 // pred_check_branch
          %277 = sbr.rel (%p275) target = $region40
        $region39: #{mha_self_attention.1} parent=31 // pred_region
          %s278 = sand.u32 %s143, 1
          %s279 = scalar_lea.sflag [#allocation12], %s278
          %s280 = sand.u32 %s143, 1
          %s281 = smul.addr %s280, 8
          %s282 = scalar_lea.vmem [#allocation11], %s281
          %284 = vsyncadd %s279, 0
          %s285 = smul.addr %s23, 8
          %s286 = scalar_lea.hbm %s5, %s285
          %s288 = sshll.u32 %s286, 4
          %s289 = int_to_ptr.hbm [resolvable:$true] %s288
          %s290 = sshll.u32 %s282, 4
          %s291 = int_to_ptr.vmem [resolvable:$true] %s290
          %293 = dma.hbm_to_vmem [thread:$0]  %s289, 128, %s291, %s279
        $region40: #{mha_self_attention.1} parent=31 // pred_fallthru
          _
      $region32: #{mha_self_attention.1} parent=5 // pred_fallthru
        _
      %p294 = scmp.le.s32.totalorder 1, %s23
      %p295 = scmp.lt.s32.totalorder %s23, 3
      %p296 = pnand %p294, %p295
      %p297 = pneg %p296
      // Predicated region
      $region41: #{mha_self_attention.1} parent=5 // pred_check
        _
      $region42: #{mha_self_attention.1} parent=5 // pred_check_branch
        %299 = sbr.rel (%p296) target = $region44
      $region43: #{mha_self_attention.1} parent=5 // pred_region
        %s300 = ssub.s32 %s23, 1
        %s301 = sand.u32 %s36, 1
        %s302 = scalar_lea.sflag [#allocation3], %s301
        %s303 = sand.u32 %s36, 1
        %s304 = smul.addr %s303, 8
        %s305 = scalar_lea.vmem [#allocation2], %s304
        // Predicated region
        $region45: #{mha_self_attention.1} parent=43 // pred_check
          %p306 = pneg %p49
        $region46: #{mha_self_attention.1} parent=43 // pred_check_branch
          %308 = sbr.rel (%p306) target = $region48
        $region47: #{mha_self_attention.1} parent=43 // pred_region
          %310 = dma.done %s302, 128
        $region48: #{mha_self_attention.1} parent=43 // pred_fallthru
          _
        // Predicated region
        $region49: #{mha_self_attention.1} parent=43 // pred_check
          %p311 = pneg %p70
        $region50: #{mha_self_attention.1} parent=43 // pred_check_branch
          %313 = sbr.rel (%p311) target = $region52
        $region51: #{mha_self_attention.1} parent=43 // pred_region
          %315 = dma.done [#allocation6], 256
        $region52: #{mha_self_attention.1} parent=43 // pred_fallthru
          _
        // Predicated region
        $region53: #{mha_self_attention.1} parent=43 // pred_check
          %p316 = pneg %p91
        $region54: #{mha_self_attention.1} parent=43 // pred_check_branch
          %318 = sbr.rel (%p316) target = $region56
        $region55: #{mha_self_attention.1} parent=43 // pred_region
          %320 = dma.done [#allocation6], 16
        $region56: #{mha_self_attention.1} parent=43 // pred_fallthru
          _
        // Predicated region
        $region57: #{mha_self_attention.1} parent=43 // pred_check
          %p321 = pneg %p112
        $region58: #{mha_self_attention.1} parent=43 // pred_check_branch
          %323 = sbr.rel (%p321) target = $region60
        $region59: #{mha_self_attention.1} parent=43 // pred_region
          %325 = dma.done [#allocation9], 256
        $region60: #{mha_self_attention.1} parent=43 // pred_fallthru
          _
        // Predicated region
        $region61: #{mha_self_attention.1} parent=43 // pred_check
          %p326 = pneg %p133
        $region62: #{mha_self_attention.1} parent=43 // pred_check_branch
          %328 = sbr.rel (%p326) target = $region64
        $region63: #{mha_self_attention.1} parent=43 // pred_region
          %330 = dma.done [#allocation9], 16
        $region64: #{mha_self_attention.1} parent=43 // pred_fallthru
          _
        %s331 = sand.u32 %s146, 1
        %s332 = scalar_lea.sflag [#allocation12], %s331
        %s333 = sand.u32 %s146, 1
        %s334 = smul.addr %s333, 8
        %s335 = scalar_lea.vmem [#allocation11], %s334
        // Predicated region
        $region65: #{mha_self_attention.1} parent=43 // pred_check
          %p336 = pneg %p159
        $region66: #{mha_self_attention.1} parent=43 // pred_check_branch
          %338 = sbr.rel (%p336) target = $region68
        $region67: #{mha_self_attention.1} parent=43 // pred_region
          %340 = dma.done %s332, 128
        $region68: #{mha_self_attention.1} parent=43 // pred_fallthru
          _
        %s341 = sand.u32 %s36, 1
        %s342 = scalar_lea.sflag [#allocation3], %s341
        %s343 = sand.u32 %s36, 1
        %s344 = smul.addr %s343, 8
        %s345 = scalar_lea.vmem [#allocation2], %s344
        %p346 = pneg %p49
        %p347 = pneg %p46
        %p348 = pneg %p70
        %p349 = pneg %p67
        %p350 = pneg %p91
        %p351 = pneg %p88
        %p352 = pneg %p112
        %p353 = pneg %p109
        %p354 = pneg %p133
        %p355 = pneg %p130
        %s356 = sand.u32 %s146, 1
        %s357 = scalar_lea.sflag [#allocation12], %s356
        %s358 = sand.u32 %s146, 1
        %s359 = smul.addr %s358, 8
        %s360 = scalar_lea.vmem [#allocation11], %s359
        %p361 = pneg %p159
        %p362 = pneg %p156
        %p363 = pneg %p185
        %p364 = pneg %p182
        %s365 = sand.u32 %s172, 1
        %s366 = scalar_lea.sflag [#allocation4], %s365
        %s367 = sand.u32 %s172, 1
        %s368 = smul.addr %s367, 8
        %s369 = scalar_lea.vmem [#allocation13], %s368
        %v371 = vld [vmem:[%s305] sm:$0xff]
        %v372 = vpack.c.bf16 %v371, %v371
        %v373 = vld [vmem:[#allocation5] sm:$0xf]
        %v374 = vld [vmem:[#allocation5 + $0x4] sm:$0xf]
        %v375 = vld [vmem:[#allocation5 + $0x8] sm:$0xf]
        %v376 = vld [vmem:[#allocation5 + $0xc] sm:$0xf]
        %v377 = vld [vmem:[#allocation7] sm:$0x1]
        %v379 = vperm.slane %v377, 0
        %v385 = vunpack.c.l.b16 %v373
        %v386 = vunpack.c.l.b16 %v374
        %v387 = vunpack.c.l.b16 %v375
        %v388 = vunpack.c.l.b16 %v376
        %v389 = vpack.c.b16 %v386, %v385
        %v390 = vpack.c.b16 %v388, %v387
        %vm393 = vcmask 261120
        %v395 = vsel %vm393, %v372, 0
        %397 = vmatpush.bf16.msra.mxu0 0
        %398 = vmatpush.bf16.msra.mxu0 0
        %399 = vmatpush.bf16.msra.mxu0 0
        %400 = vmatpush.bf16.msra.mxu0 0
        %401 = vmatpush.bf16.msra.mxu0 0
        %402 = vmatpush.bf16.msra.mxu0 0
        %403 = vmatpush.bf16.msra.mxu0 %v390
        %404 = vmatpush.bf16.msra.mxu0 %v389
        %405 = vmatmul.bf16.gmra.mxu0 %v395
        %v406 = vpop.f32.mrf.mxu0
        %v407 = vadd.f32 %v379, %v406
        %v408 = vpop.f32.mrf.mxu0
        %409 = vdwg.mxu0
        %411 = vrot.lane.b32.xlu0 %v407, 120
        %v412 = vpop.permute.xlu0 %411
        %414 = vrot.lane.b32.xlu0 %v407, 112
        %v415 = vpop.permute.xlu0 %414
        %417 = vrot.lane.b32.xlu0 %v407, 104
        %v418 = vpop.permute.xlu0 %417
        %v420 = vrot.slane %v415, 4
        %vm421 = vcmask 1047556
        %v422 = vsel %vm421, %v420, %v407
        %v423 = vrot.slane %v407, 4
        %v424 = vsel %vm421, %v415, %v423
        %v426 = vunpack.c.l.s4 1983009808
        %v427 = vunpack.c.0.s8 %v426
        %v428 = vperm.slane %v422, %v427
        %v430 = vunpack.c.l.s4 1983009808
        %v431 = vunpack.c.0.s8 %v430
        %v432 = vperm.slane %v424, %v431
        %v433 = vrot.slane %v418, 4
        %v434 = vsel %vm421, %v433, %v412
        %v435 = vrot.slane %v412, 4
        %v436 = vsel %vm421, %v418, %v435
        %v438 = vunpack.c.l.s4 1983009808
        %v439 = vunpack.c.0.s8 %v438
        %v440 = vperm.slane %v434, %v439
        %v442 = vunpack.c.l.s4 1983009808
        %v443 = vunpack.c.0.s8 %v442
        %v444 = vperm.slane %v436, %v443
        %v445 = vrot.slane %v440, 4
        %v446 = vsel %vm421, %v445, %v428
        %v447 = vrot.slane %v428, 4
        %v448 = vsel %vm421, %v440, %v447
        %v450 = vunpack.c.l.s4 1934713408
        %v451 = vunpack.c.0.s8 %v450
        %v452 = vperm.slane %v446, %v451
        %v454 = vunpack.c.l.s4 1934713408
        %v455 = vunpack.c.0.s8 %v454
        %v456 = vperm.slane %v448, %v455
        %v457 = vrot.slane %v444, 4
        %v458 = vsel %vm421, %v457, %v432
        %v459 = vrot.slane %v432, 4
        %v460 = vsel %vm421, %v444, %v459
        %v462 = vunpack.c.l.s4 1934713408
        %v463 = vunpack.c.0.s8 %v462
        %v464 = vperm.slane %v458, %v463
        %v466 = vunpack.c.l.s4 1934713408
        %v467 = vunpack.c.0.s8 %v466
        %v468 = vperm.slane %v460, %v467
        %v469 = vrot.slane %v452, 4
        %v470 = vsel %vm421, 0.0, %v469
        %v471 = vrot.slane %v456, 4
        %v472 = vsel %vm421, 0.0, %v471
        %v473 = vrot.slane %v464, 4
        %v474 = vsel %vm421, 0.0, %v473
        %v475 = vrot.slane %v468, 4
        %v476 = vsel %vm421, 0.0, %v475
        %v477 = vsel %vm421, %v471, %v452
        %v479 = vunpack.c.l.s4 1983009808
        %v480 = vunpack.c.0.s8 %v479
        %v481 = vperm.slane %v477, %v480
        %v482 = vrot.slane %v472, 4
        %v483 = vsel %vm421, %v482, %v470
        %v485 = vunpack.c.l.s4 1983009808
        %v486 = vunpack.c.0.s8 %v485
        %v487 = vperm.slane %v483, %v486
        %v488 = vsel %vm421, %v475, %v464
        %v490 = vunpack.c.l.s4 1983009808
        %v491 = vunpack.c.0.s8 %v490
        %v492 = vperm.slane %v488, %v491
        %v493 = vrot.slane %v476, 4
        %v494 = vsel %vm421, %v493, %v474
        %v496 = vunpack.c.l.s4 1983009808
        %v497 = vunpack.c.0.s8 %v496
        %v498 = vperm.slane %v494, %v497
        %v499 = vrot.slane %v487, 4
        %v500 = vsel %vm421, %v499, %v481
        %v501 = vrot.slane %v481, 4
        %v502 = vsel %vm421, %v487, %v501
        %v504 = vunpack.c.l.s4 1934713408
        %v505 = vunpack.c.0.s8 %v504
        %v506 = vperm.slane %v500, %v505
        %v508 = vunpack.c.l.s4 1934713408
        %v509 = vunpack.c.0.s8 %v508
        %v510 = vperm.slane %v502, %v509
        %v511 = vrot.slane %v498, 4
        %v512 = vsel %vm421, %v511, %v492
        %v513 = vrot.slane %v492, 4
        %v514 = vsel %vm421, %v498, %v513
        %v516 = vunpack.c.l.s4 1934713408
        %v517 = vunpack.c.0.s8 %v516
        %v518 = vperm.slane %v512, %v517
        %v520 = vunpack.c.l.s4 1934713408
        %v521 = vunpack.c.0.s8 %v520
        %v522 = vperm.slane %v514, %v521
        %v523 = vrot.slane %v518, 4
        %v524 = vsel %vm421, %v523, %v506
        %v525 = vrot.slane %v506, 4
        %v526 = vsel %vm421, %v518, %v525
        %v527 = vrot.slane %v522, 4
        %v528 = vsel %vm421, %v527, %v510
        %v529 = vrot.slane %v510, 4
        %v530 = vsel %vm421, %v522, %v529
        %531 = vrot.lane.b32.xlu0 %v407, 96
        %v532 = vpop.permute.xlu0 %531
        %533 = vrot.lane.b32.xlu0 %v412, 96
        %v534 = vpop.permute.xlu0 %533
        %535 = vrot.lane.b32.xlu0 %v415, 96
        %v536 = vpop.permute.xlu0 %535
        %537 = vrot.lane.b32.xlu0 %v418, 96
        %v538 = vpop.permute.xlu0 %537
        %v543 = vrot.slane %v536, 4
        %v544 = vsel %vm421, %v543, %v532
        %v545 = vrot.slane %v532, 4
        %v546 = vsel %vm421, %v536, %v545
        %v548 = vunpack.c.l.s4 1983009808
        %v549 = vunpack.c.0.s8 %v548
        %v550 = vperm.slane %v544, %v549
        %v552 = vunpack.c.l.s4 1983009808
        %v553 = vunpack.c.0.s8 %v552
        %v554 = vperm.slane %v546, %v553
        %v555 = vrot.slane %v538, 4
        %v556 = vsel %vm421, %v555, %v534
        %v557 = vrot.slane %v534, 4
        %v558 = vsel %vm421, %v538, %v557
        %v560 = vunpack.c.l.s4 1983009808
        %v561 = vunpack.c.0.s8 %v560
        %v562 = vperm.slane %v556, %v561
        %v564 = vunpack.c.l.s4 1983009808
        %v565 = vunpack.c.0.s8 %v564
        %v566 = vperm.slane %v558, %v565
        %v567 = vrot.slane %v562, 4
        %v568 = vsel %vm421, %v567, %v550
        %v569 = vrot.slane %v550, 4
        %v570 = vsel %vm421, %v562, %v569
        %v572 = vunpack.c.l.s4 1934713408
        %v573 = vunpack.c.0.s8 %v572
        %v574 = vperm.slane %v568, %v573
        %v576 = vunpack.c.l.s4 1934713408
        %v577 = vunpack.c.0.s8 %v576
        %v578 = vperm.slane %v570, %v577
        %v579 = vrot.slane %v566, 4
        %v580 = vsel %vm421, %v579, %v554
        %v581 = vrot.slane %v554, 4
        %v582 = vsel %vm421, %v566, %v581
        %v584 = vunpack.c.l.s4 1934713408
        %v585 = vunpack.c.0.s8 %v584
        %v586 = vperm.slane %v580, %v585
        %v588 = vunpack.c.l.s4 1934713408
        %v589 = vunpack.c.0.s8 %v588
        %v590 = vperm.slane %v582, %v589
        %v591 = vrot.slane %v574, 4
        %v592 = vsel %vm421, 0.0, %v591
        %v593 = vrot.slane %v578, 4
        %v594 = vsel %vm421, 0.0, %v593
        %v595 = vrot.slane %v586, 4
        %v596 = vsel %vm421, 0.0, %v595
        %v597 = vrot.slane %v590, 4
        %v598 = vsel %vm421, 0.0, %v597
        %v599 = vsel %vm421, %v593, %v574
        %v601 = vunpack.c.l.s4 1983009808
        %v602 = vunpack.c.0.s8 %v601
        %v603 = vperm.slane %v599, %v602
        %v604 = vrot.slane %v594, 4
        %v605 = vsel %vm421, %v604, %v592
        %v607 = vunpack.c.l.s4 1983009808
        %v608 = vunpack.c.0.s8 %v607
        %v609 = vperm.slane %v605, %v608
        %v610 = vsel %vm421, %v597, %v586
        %v612 = vunpack.c.l.s4 1983009808
        %v613 = vunpack.c.0.s8 %v612
        %v614 = vperm.slane %v610, %v613
        %v615 = vrot.slane %v598, 4
        %v616 = vsel %vm421, %v615, %v596
        %v618 = vunpack.c.l.s4 1983009808
        %v619 = vunpack.c.0.s8 %v618
        %v620 = vperm.slane %v616, %v619
        %v621 = vrot.slane %v609, 4
        %v622 = vsel %vm421, %v621, %v603
        %v623 = vrot.slane %v603, 4
        %v624 = vsel %vm421, %v609, %v623
        %v626 = vunpack.c.l.s4 1934713408
        %v627 = vunpack.c.0.s8 %v626
        %v628 = vperm.slane %v622, %v627
        %v630 = vunpack.c.l.s4 1934713408
        %v631 = vunpack.c.0.s8 %v630
        %v632 = vperm.slane %v624, %v631
        %v633 = vrot.slane %v620, 4
        %v634 = vsel %vm421, %v633, %v614
        %v635 = vrot.slane %v614, 4
        %v636 = vsel %vm421, %v620, %v635
        %v638 = vunpack.c.l.s4 1934713408
        %v639 = vunpack.c.0.s8 %v638
        %v640 = vperm.slane %v634, %v639
        %v642 = vunpack.c.l.s4 1934713408
        %v643 = vunpack.c.0.s8 %v642
        %v644 = vperm.slane %v636, %v643
        %v645 = vrot.slane %v640, 4
        %v646 = vsel %vm421, %v645, %v628
        %v647 = vrot.slane %v628, 4
        %v648 = vsel %vm421, %v640, %v647
        %v649 = vrot.slane %v644, 4
        %v650 = vsel %vm421, %v649, %v632
        %v651 = vrot.slane %v632, 4
        %v652 = vsel %vm421, %v644, %v651
        %653 = vrot.lane.b32.xlu0 %v407, 64
        %v654 = vpop.permute.xlu0 %653
        %655 = vrot.lane.b32.xlu0 %v412, 64
        %v656 = vpop.permute.xlu0 %655
        %657 = vrot.lane.b32.xlu0 %v415, 64
        %v658 = vpop.permute.xlu0 %657
        %659 = vrot.lane.b32.xlu0 %v418, 64
        %v660 = vpop.permute.xlu0 %659
        %v665 = vrot.slane %v658, 4
        %v666 = vsel %vm421, %v665, %v654
        %v667 = vrot.slane %v654, 4
        %v668 = vsel %vm421, %v658, %v667
        %v670 = vunpack.c.l.s4 1983009808
        %v671 = vunpack.c.0.s8 %v670
        %v672 = vperm.slane %v666, %v671
        %v674 = vunpack.c.l.s4 1983009808
        %v675 = vunpack.c.0.s8 %v674
        %v676 = vperm.slane %v668, %v675
        %v677 = vrot.slane %v660, 4
        %v678 = vsel %vm421, %v677, %v656
        %v679 = vrot.slane %v656, 4
        %v680 = vsel %vm421, %v660, %v679
        %v682 = vunpack.c.l.s4 1983009808
        %v683 = vunpack.c.0.s8 %v682
        %v684 = vperm.slane %v678, %v683
        %v686 = vunpack.c.l.s4 1983009808
        %v687 = vunpack.c.0.s8 %v686
        %v688 = vperm.slane %v680, %v687
        %v689 = vrot.slane %v684, 4
        %v690 = vsel %vm421, %v689, %v672
        %v691 = vrot.slane %v672, 4
        %v692 = vsel %vm421, %v684, %v691
        %v694 = vunpack.c.l.s4 1934713408
        %v695 = vunpack.c.0.s8 %v694
        %v696 = vperm.slane %v690, %v695
        %v698 = vunpack.c.l.s4 1934713408
        %v699 = vunpack.c.0.s8 %v698
        %v700 = vperm.slane %v692, %v699
        %v701 = vrot.slane %v688, 4
        %v702 = vsel %vm421, %v701, %v676
        %v703 = vrot.slane %v676, 4
        %v704 = vsel %vm421, %v688, %v703
        %v706 = vunpack.c.l.s4 1934713408
        %v707 = vunpack.c.0.s8 %v706
        %v708 = vperm.slane %v702, %v707
        %v710 = vunpack.c.l.s4 1934713408
        %v711 = vunpack.c.0.s8 %v710
        %v712 = vperm.slane %v704, %v711
        %v713 = vrot.slane %v696, 4
        %v714 = vsel %vm421, 0.0, %v713
        %v715 = vrot.slane %v700, 4
        %v716 = vsel %vm421, 0.0, %v715
        %v717 = vrot.slane %v708, 4
        %v718 = vsel %vm421, 0.0, %v717
        %v719 = vrot.slane %v712, 4
        %v720 = vsel %vm421, 0.0, %v719
        %v721 = vsel %vm421, %v715, %v696
        %v723 = vunpack.c.l.s4 1983009808
        %v724 = vunpack.c.0.s8 %v723
        %v725 = vperm.slane %v721, %v724
        %v726 = vrot.slane %v716, 4
        %v727 = vsel %vm421, %v726, %v714
        %v729 = vunpack.c.l.s4 1983009808
        %v730 = vunpack.c.0.s8 %v729
        %v731 = vperm.slane %v727, %v730
        %v732 = vsel %vm421, %v719, %v708
        %v734 = vunpack.c.l.s4 1983009808
        %v735 = vunpack.c.0.s8 %v734
        %v736 = vperm.slane %v732, %v735
        %v737 = vrot.slane %v720, 4
        %v738 = vsel %vm421, %v737, %v718
        %v740 = vunpack.c.l.s4 1983009808
        %v741 = vunpack.c.0.s8 %v740
        %v742 = vperm.slane %v738, %v741
        %v743 = vrot.slane %v731, 4
        %v744 = vsel %vm421, %v743, %v725
        %v745 = vrot.slane %v725, 4
        %v746 = vsel %vm421, %v731, %v745
        %v748 = vunpack.c.l.s4 1934713408
        %v749 = vunpack.c.0.s8 %v748
        %v750 = vperm.slane %v744, %v749
        %v752 = vunpack.c.l.s4 1934713408
        %v753 = vunpack.c.0.s8 %v752
        %v754 = vperm.slane %v746, %v753
        %v755 = vrot.slane %v742, 4
        %v756 = vsel %vm421, %v755, %v736
        %v757 = vrot.slane %v736, 4
        %v758 = vsel %vm421, %v742, %v757
        %v760 = vunpack.c.l.s4 1934713408
        %v761 = vunpack.c.0.s8 %v760
        %v762 = vperm.slane %v756, %v761
        %v764 = vunpack.c.l.s4 1934713408
        %v765 = vunpack.c.0.s8 %v764
        %v766 = vperm.slane %v758, %v765
        %v767 = vrot.slane %v762, 4
        %v768 = vsel %vm421, %v767, %v750
        %v769 = vrot.slane %v750, 4
        %v770 = vsel %vm421, %v762, %v769
        %v771 = vrot.slane %v766, 4
        %v772 = vsel %vm421, %v771, %v754
        %v773 = vrot.slane %v754, 4
        %v774 = vsel %vm421, %v766, %v773
        %v775 = vpack.c.bf16 %v524, %v524
        %v776 = vpack.c.bf16 %v526, %v526
        %v777 = vpack.c.bf16 %v528, %v528
        %v778 = vpack.c.bf16 %v530, %v530
        %v779 = vpack.c.bf16 %v646, %v646
        %v780 = vpack.c.bf16 %v648, %v648
        %v781 = vpack.c.bf16 %v650, %v650
        %v782 = vpack.c.bf16 %v652, %v652
        %v783 = vld [vmem:[%s335] sm:$0xff]
        %vm784 = vcmask 64512
        %v786 = vsel %vm784, %v775, 0
        %v789 = vsel %vm784, %v779, 0
        %791 = vmatpush.bf16.xpose.msra.mxu0 0
        %792 = vmatpush.bf16.xpose.msra.mxu0 0
        %793 = vmatpush.bf16.xpose.msra.mxu0 0
        %794 = vmatpush.bf16.xpose.msra.mxu0 0
        %795 = vmatpush.bf16.xpose.msra.mxu0 0
        %796 = vmatpush.bf16.xpose.msra.mxu0 0
        %797 = vmatpush.bf16.xpose.msra.mxu0 0
        %798 = vmatpush.bf16.xpose.msra.mxu0 %v789
        %799 = vmatmul.bf16.gmra.mxu0 %v786
        %v800 = vpop.f32.mrf.mxu0
        %v801 = vadd.f32 %v783, %v800
        %v802 = vpop.f32.mrf.mxu0
        %803 = vdwg.mxu0
        %v805 = vsel %vm784, %v776, 0
        %v808 = vsel %vm784, %v780, 0
        %810 = vmatpush.bf16.xpose.msra.mxu0 0
        %811 = vmatpush.bf16.xpose.msra.mxu0 0
        %812 = vmatpush.bf16.xpose.msra.mxu0 0
        %813 = vmatpush.bf16.xpose.msra.mxu0 0
        %814 = vmatpush.bf16.xpose.msra.mxu0 0
        %815 = vmatpush.bf16.xpose.msra.mxu0 0
        %816 = vmatpush.bf16.xpose.msra.mxu0 0
        %817 = vmatpush.bf16.xpose.msra.mxu0 %v808
        %818 = vmatmul.bf16.gmra.mxu0 %v805
        %v819 = vpop.f32.mrf.mxu0
        %v820 = vadd.f32 %v783, %v819
        %v821 = vpop.f32.mrf.mxu0
        %822 = vdwg.mxu0
        %v824 = vsel %vm784, %v777, 0
        %v827 = vsel %vm784, %v781, 0
        %829 = vmatpush.bf16.xpose.msra.mxu0 0
        %830 = vmatpush.bf16.xpose.msra.mxu0 0
        %831 = vmatpush.bf16.xpose.msra.mxu0 0
        %832 = vmatpush.bf16.xpose.msra.mxu0 0
        %833 = vmatpush.bf16.xpose.msra.mxu0 0
        %834 = vmatpush.bf16.xpose.msra.mxu0 0
        %835 = vmatpush.bf16.xpose.msra.mxu0 0
        %836 = vmatpush.bf16.xpose.msra.mxu0 %v827
        %837 = vmatmul.bf16.gmra.mxu0 %v824
        %v838 = vpop.f32.mrf.mxu0
        %v839 = vadd.f32 %v783, %v838
        %v840 = vpop.f32.mrf.mxu0
        %841 = vdwg.mxu0
        %v843 = vsel %vm784, %v778, 0
        %v846 = vsel %vm784, %v782, 0
        %848 = vmatpush.bf16.xpose.msra.mxu0 0
        %849 = vmatpush.bf16.xpose.msra.mxu0 0
        %850 = vmatpush.bf16.xpose.msra.mxu0 0
        %851 = vmatpush.bf16.xpose.msra.mxu0 0
        %852 = vmatpush.bf16.xpose.msra.mxu0 0
        %853 = vmatpush.bf16.xpose.msra.mxu0 0
        %854 = vmatpush.bf16.xpose.msra.mxu0 0
        %855 = vmatpush.bf16.xpose.msra.mxu0 %v846
        %856 = vmatmul.bf16.gmra.mxu0 %v843
        %v857 = vpop.f32.mrf.mxu0
        %v858 = vadd.f32 %v783, %v857
        %v859 = vpop.f32.mrf.mxu0
        %860 = vdwg.mxu0
        %v861 = vsel %vm784, %v801, -inf
        %862 = vmax.xlane.f32.xlu0 %v861
        %v863 = vpop.xlane.xlu0 %862
        %v864 = vsel %vm784, %v820, -inf
        %865 = vmax.xlane.f32.xlu0 %v864
        %v866 = vpop.xlane.xlu0 %865
        %v867 = vsel %vm784, %v839, -inf
        %868 = vmax.xlane.f32.xlu0 %v867
        %v869 = vpop.xlane.xlu0 %868
        %v870 = vsel %vm784, %v858, -inf
        %871 = vmax.xlane.f32.xlu0 %v870
        %v872 = vpop.xlane.xlu0 %871
        %v873 = vsub.f32 %v801, %v863
        %v874 = vsub.f32 %v820, %v866
        %v875 = vsub.f32 %v839, %v869
        %v876 = vsub.f32 %v858, %v872
        %v877 = vmul.f32 %v873, 1.442695
        %v878 = vpow.pop %v877
        %v879 = vmul.f32 %v874, 1.442695
        %v880 = vpow.pop %v879
        %v881 = vmul.f32 %v875, 1.442695
        %v882 = vpow.pop %v881
        %v883 = vmul.f32 %v876, 1.442695
        %v884 = vpow.pop %v883
        %v885 = vsel %vm784, %v878, 0.0
        %886 = vadd.xlane.f32.xlu0 %v885
        %v887 = vpop.xlane.xlu0 %886
        %v888 = vsel %vm784, %v880, 0.0
        %889 = vadd.xlane.f32.xlu0 %v888
        %v890 = vpop.xlane.xlu0 %889
        %v891 = vsel %vm784, %v882, 0.0
        %892 = vadd.xlane.f32.xlu0 %v891
        %v893 = vpop.xlane.xlu0 %892
        %v894 = vsel %vm784, %v884, 0.0
        %895 = vadd.xlane.f32.xlu0 %v894
        %v896 = vpop.xlane.xlu0 %895
        %v897 = vrcp.pop %v887
        %v898 = vrcp.pop %v890
        %v899 = vrcp.pop %v893
        %v900 = vrcp.pop %v896
        %v901 = vmul.f32 %v878, %v897
        %v902 = vmul.f32 %v880, %v898
        %v903 = vmul.f32 %v882, %v899
        %v904 = vmul.f32 %v884, %v900
        %v905 = vpack.c.bf16 %v901, %v901
        %v906 = vpack.c.bf16 %v902, %v902
        %v907 = vpack.c.bf16 %v903, %v903
        %v908 = vpack.c.bf16 %v904, %v904
        %v909 = vpack.c.bf16 %v768, %v768
        %v910 = vpack.c.bf16 %v770, %v770
        %v911 = vpack.c.bf16 %v772, %v772
        %v912 = vpack.c.bf16 %v774, %v774
        %v914 = vsel %vm784, %v905, 0
        %vm916 = vcmask 1043456
        %v918 = vsel %vm916, %v909, 0
        %920 = vmatpush.bf16.msra.mxu0 0
        %921 = vmatpush.bf16.msra.mxu0 0
        %922 = vmatpush.bf16.msra.mxu0 0
        %923 = vmatpush.bf16.msra.mxu0 0
        %924 = vmatpush.bf16.msra.mxu0 0
        %925 = vmatpush.bf16.msra.mxu0 0
        %926 = vmatpush.bf16.msra.mxu0 0
        %927 = vmatpush.bf16.msra.mxu0 %v918
        %928 = vmatmul.bf16.gmra.mxu0 %v914
        %v929 = vpop.f32.mrf.mxu0
        %v930 = vadd.f32 0.0, %v929
        %v931 = vpop.f32.mrf.mxu0
        %932 = vdwg.mxu0
        %v934 = vsel %vm784, %v906, 0
        %v937 = vsel %vm916, %v910, 0
        %939 = vmatpush.bf16.msra.mxu0 0
        %940 = vmatpush.bf16.msra.mxu0 0
        %941 = vmatpush.bf16.msra.mxu0 0
        %942 = vmatpush.bf16.msra.mxu0 0
        %943 = vmatpush.bf16.msra.mxu0 0
        %944 = vmatpush.bf16.msra.mxu0 0
        %945 = vmatpush.bf16.msra.mxu0 0
        %946 = vmatpush.bf16.msra.mxu0 %v937
        %947 = vmatmul.bf16.gmra.mxu0 %v934
        %v948 = vpop.f32.mrf.mxu0
        %v949 = vadd.f32 0.0, %v948
        %v950 = vpop.f32.mrf.mxu0
        %951 = vdwg.mxu0
        %v953 = vsel %vm784, %v907, 0
        %v956 = vsel %vm916, %v911, 0
        %958 = vmatpush.bf16.msra.mxu0 0
        %959 = vmatpush.bf16.msra.mxu0 0
        %960 = vmatpush.bf16.msra.mxu0 0
        %961 = vmatpush.bf16.msra.mxu0 0
        %962 = vmatpush.bf16.msra.mxu0 0
        %963 = vmatpush.bf16.msra.mxu0 0
        %964 = vmatpush.bf16.msra.mxu0 0
        %965 = vmatpush.bf16.msra.mxu0 %v956
        %966 = vmatmul.bf16.gmra.mxu0 %v953
        %v967 = vpop.f32.mrf.mxu0
        %v968 = vadd.f32 0.0, %v967
        %v969 = vpop.f32.mrf.mxu0
        %970 = vdwg.mxu0
        %v972 = vsel %vm784, %v908, 0
        %v975 = vsel %vm916, %v912, 0
        %977 = vmatpush.bf16.msra.mxu0 0
        %978 = vmatpush.bf16.msra.mxu0 0
        %979 = vmatpush.bf16.msra.mxu0 0
        %980 = vmatpush.bf16.msra.mxu0 0
        %981 = vmatpush.bf16.msra.mxu0 0
        %982 = vmatpush.bf16.msra.mxu0 0
        %983 = vmatpush.bf16.msra.mxu0 0
        %984 = vmatpush.bf16.msra.mxu0 %v975
        %985 = vmatmul.bf16.gmra.mxu0 %v972
        %v986 = vpop.f32.mrf.mxu0
        %v987 = vadd.f32 0.0, %v986
        %v988 = vpop.f32.mrf.mxu0
        %989 = vdwg.mxu0
        %v990 = vrot.slane %v968, 4
        %v991 = vsel %vm421, %v990, %v930
        %v992 = vrot.slane %v930, 4
        %v993 = vsel %vm421, %v968, %v992
        %v995 = vunpack.c.l.s4 1983009808
        %v996 = vunpack.c.0.s8 %v995
        %v997 = vperm.slane %v991, %v996
        %v999 = vunpack.c.l.s4 1983009808
        %v1000 = vunpack.c.0.s8 %v999
        %v1001 = vperm.slane %v993, %v1000
        %v1002 = vrot.slane %v987, 4
        %v1003 = vsel %vm421, %v1002, %v949
        %v1004 = vrot.slane %v949, 4
        %v1005 = vsel %vm421, %v987, %v1004
        %v1007 = vunpack.c.l.s4 1983009808
        %v1008 = vunpack.c.0.s8 %v1007
        %v1009 = vperm.slane %v1003, %v1008
        %v1011 = vunpack.c.l.s4 1983009808
        %v1012 = vunpack.c.0.s8 %v1011
        %v1013 = vperm.slane %v1005, %v1012
        %v1014 = vrot.slane %v1009, 4
        %v1015 = vsel %vm421, %v1014, %v997
        %v1016 = vrot.slane %v997, 4
        %v1017 = vsel %vm421, %v1009, %v1016
        %v1019 = vunpack.c.l.s4 1934713408
        %v1020 = vunpack.c.0.s8 %v1019
        %v1021 = vperm.slane %v1015, %v1020
        %v1023 = vunpack.c.l.s4 1934713408
        %v1024 = vunpack.c.0.s8 %v1023
        %v1025 = vperm.slane %v1017, %v1024
        %v1026 = vrot.slane %v1013, 4
        %v1027 = vsel %vm421, %v1026, %v1001
        %v1028 = vrot.slane %v1001, 4
        %v1029 = vsel %vm421, %v1013, %v1028
        %v1031 = vunpack.c.l.s4 1934713408
        %v1032 = vunpack.c.0.s8 %v1031
        %v1033 = vperm.slane %v1027, %v1032
        %v1035 = vunpack.c.l.s4 1934713408
        %v1036 = vunpack.c.0.s8 %v1035
        %v1037 = vperm.slane %v1029, %v1036
        %v1038 = vrot.slane %v1021, 4
        %v1039 = vsel %vm421, 0.0, %v1038
        %v1040 = vrot.slane %v1025, 4
        %v1041 = vsel %vm421, 0.0, %v1040
        %v1042 = vrot.slane %v1033, 4
        %v1043 = vsel %vm421, 0.0, %v1042
        %v1044 = vrot.slane %v1037, 4
        %v1045 = vsel %vm421, 0.0, %v1044
        %v1046 = vsel %vm421, %v1040, %v1021
        %v1048 = vunpack.c.l.s4 1983009808
        %v1049 = vunpack.c.0.s8 %v1048
        %v1050 = vperm.slane %v1046, %v1049
        %v1051 = vrot.slane %v1041, 4
        %v1052 = vsel %vm421, %v1051, %v1039
        %v1054 = vunpack.c.l.s4 1983009808
        %v1055 = vunpack.c.0.s8 %v1054
        %v1056 = vperm.slane %v1052, %v1055
        %v1057 = vsel %vm421, %v1044, %v1033
        %v1059 = vunpack.c.l.s4 1983009808
        %v1060 = vunpack.c.0.s8 %v1059
        %v1061 = vperm.slane %v1057, %v1060
        %v1062 = vrot.slane %v1045, 4
        %v1063 = vsel %vm421, %v1062, %v1043
        %v1065 = vunpack.c.l.s4 1983009808
        %v1066 = vunpack.c.0.s8 %v1065
        %v1067 = vperm.slane %v1063, %v1066
        %v1068 = vrot.slane %v1056, 4
        %v1069 = vsel %vm421, %v1068, %v1050
        %v1070 = vrot.slane %v1050, 4
        %v1071 = vsel %vm421, %v1056, %v1070
        %v1073 = vunpack.c.l.s4 1934713408
        %v1074 = vunpack.c.0.s8 %v1073
        %v1075 = vperm.slane %v1069, %v1074
        %v1077 = vunpack.c.l.s4 1934713408
        %v1078 = vunpack.c.0.s8 %v1077
        %v1079 = vperm.slane %v1071, %v1078
        %v1080 = vrot.slane %v1067, 4
        %v1081 = vsel %vm421, %v1080, %v1061
        %v1082 = vrot.slane %v1061, 4
        %v1083 = vsel %vm421, %v1067, %v1082
        %v1085 = vunpack.c.l.s4 1934713408
        %v1086 = vunpack.c.0.s8 %v1085
        %v1087 = vperm.slane %v1081, %v1086
        %v1089 = vunpack.c.l.s4 1934713408
        %v1090 = vunpack.c.0.s8 %v1089
        %v1091 = vperm.slane %v1083, %v1090
        %v1092 = vrot.slane %v1087, 4
        %v1093 = vsel %vm421, %v1092, %v1075
        %v1094 = vrot.slane %v1075, 4
        %v1095 = vsel %vm421, %v1087, %v1094
        %v1096 = vrot.slane %v1091, 4
        %v1097 = vsel %vm421, %v1096, %v1079
        %v1098 = vrot.slane %v1079, 4
        %v1099 = vsel %vm421, %v1091, %v1098
        %1101 = vrot.lane.b32.xlu0 %v1095, 8
        %v1102 = vpop.permute.xlu0 %1101
        %1105 = vrot.lane.b32.xlu0 %v1097, 16
        %v1106 = vpop.permute.xlu0 %1105
        %1109 = vrot.lane.b32.xlu0 %v1099, 24
        %v1110 = vpop.permute.xlu0 %1109
        %v1112 = vsel %vm784, %v1093, %v1102
        %vm1113 = vcmask 130048
        %v1114 = vsel %vm1113, %v1112, %v1106
        %vm1115 = vcmask 195584
        %v1116 = vsel %vm1115, %v1114, %v1110
        %v1117 = vpack.c.bf16 %v1116, %v1116
        %v1118 = vld [vmem:[#allocation8] sm:$0xf]
        %v1119 = vld [vmem:[#allocation8 + $0x4] sm:$0xf]
        %v1120 = vld [vmem:[#allocation8 + $0x8] sm:$0xf]
        %v1121 = vld [vmem:[#allocation8 + $0xc] sm:$0xf]
        %v1122 = vld [vmem:[#allocation10] sm:$0x1]
        %v1124 = vperm.slane %v1122, 0
        %v1130 = vunpack.c.l.b16 %v1118
        %v1131 = vunpack.c.l.b16 %v1119
        %v1132 = vunpack.c.l.b16 %v1120
        %v1133 = vunpack.c.l.b16 %v1121
        %v1134 = vpack.c.b16 %v1131, %v1130
        %v1135 = vpack.c.b16 %v1133, %v1132
        %v1139 = vsel %vm393, %v1117, 0
        %1141 = vmatpush.bf16.msra.mxu0 0
        %1142 = vmatpush.bf16.msra.mxu0 0
        %1143 = vmatpush.bf16.msra.mxu0 0
        %1144 = vmatpush.bf16.msra.mxu0 0
        %1145 = vmatpush.bf16.msra.mxu0 0
        %1146 = vmatpush.bf16.msra.mxu0 0
        %1147 = vmatpush.bf16.msra.mxu0 %v1135
        %1148 = vmatpush.bf16.msra.mxu0 %v1134
        %1149 = vmatmul.bf16.gmra.mxu0 %v1139
        %v1150 = vpop.f32.mrf.mxu0
        %v1151 = vadd.f32 %v1124, %v1150
        %v1152 = vpop.f32.mrf.mxu0
        %1153 = vdwg.mxu0
        %1154 = vst.msk [vmem:[%s369] sm:$0xff] %vm393, %v1151
        %s1155 = sand.u32 %s172, 1
        %s1156 = scalar_lea.sflag [#allocation4], %s1155
        %s1157 = sand.u32 %s172, 1
        %s1158 = smul.addr %s1157, 8
        %s1159 = scalar_lea.vmem [#allocation13], %s1158
        // Predicated region
        $region69: #{mha_self_attention.1} parent=43 // pred_check
          %p1160 = pneg %p182
        $region70: #{mha_self_attention.1} parent=43 // pred_check_branch
          %1162 = sbr.rel (%p1160) target = $region72
        $region71: #{mha_self_attention.1} parent=43 // pred_region
          %1164 = vsyncadd %s1156, 0
          %s1165 = smul.addr %s28, 8
          %s1166 = scalar_lea.hbm %s6, %s1165
          %s1168 = sshll.u32 %s1159, 4
          %s1169 = int_to_ptr.vmem [resolvable:$true] %s1168
          %s1170 = sshll.u32 %s1166, 4
          %s1171 = int_to_ptr.hbm [resolvable:$true] %s1170
          %1173 = dma.vmem_to_hbm [thread:$0]  %s1169, 128, %s1171, %s1156
        $region72: #{mha_self_attention.1} parent=43 // pred_fallthru
          _
      $region44: #{mha_self_attention.1} parent=5 // pred_fallthru
        _
      %p1174 = scmp.le.s32.totalorder 2, %s23
      // Predicated region
      $region73: #{mha_self_attention.1} parent=5 // pred_check
        %p1175 = pneg %p1174
      $region74: #{mha_self_attention.1} parent=5 // pred_check_branch
        %1177 = sbr.rel (%p1175) target = $region76
      $region75: #{mha_self_attention.1} parent=5 // pred_region
        %s1178 = ssub.s32 %s23, 2
        // Predicated region
        $region77: #{mha_self_attention.1} parent=75 // pred_check
          %p1179 = pneg %p188
        $region78: #{mha_self_attention.1} parent=75 // pred_check_branch
          %1181 = sbr.rel (%p1179) target = $region80
        $region79: #{mha_self_attention.1} parent=75 // pred_region
          %s1182 = sand.u32 %s173, 1
          %s1183 = scalar_lea.sflag [#allocation4], %s1182
          %s1184 = sand.u32 %s173, 1
          %s1185 = smul.addr %s1184, 8
          %s1186 = scalar_lea.vmem [#allocation13], %s1185
          %1188 = dma.done %s1183, 128
        $region80: #{mha_self_attention.1} parent=75 // pred_fallthru
          _
      $region76: #{mha_self_attention.1} parent=5 // pred_fallthru
        _
    $region6: #{mha_self_attention.1} parent=1 // loop_footer
      %s27 = sadd.s32 1, %s23
    $region7: #{mha_self_attention.1} parent=1 // loop_footer_branch
      %22 = sbr.rel target = $region3
    $region8: #{mha_self_attention.1} parent=1 // loop_exit
      _
    %1189 = vsyncpa [#allocation3], 1
    %s1190 = scalar_lea.sflag [#allocation3], 1
    %1191 = vsyncpa %s1190, 1
    %1192 = vsyncpa [#allocation6], 1
    %1193 = vsyncpa [#allocation9], 1
    %1194 = vsyncpa [#allocation12], 1
    %s1195 = scalar_lea.sflag [#allocation12], 1
    %1196 = vsyncpa %s1195, 1
    %1197 = vsyncpa [#allocation4], 1
    %s1198 = scalar_lea.sflag [#allocation4], 1
    %1199 = vsyncpa %s1198, 1

</llo_original>
